<compile_context>
chip_gen: v6e
topology: v6e:2x2x1
jax: 0.10.0
libtpu: 0.0.40
codegen_flags: <defaults>
</compile_context>

<pallas_src>
import functools

import jax
import jax.numpy as jnp
from jax.experimental import pallas as pl
from jax.experimental.pallas import tpu as pltpu


def _round_up(x, m):
    return ((x + m - 1) // m) * m


def _task_decoder_kernel(x_ref, w_ref, b_ref, out_ref):
    """One fused linear head over a [TILE_M, H] row tile.

    x_ref  : [TILE_M, H]    bf16 input rows (pipelined over the grid)
    w_ref  : [H, Dpad]      bf16 concatenated + lane-padded weights (resident)
    b_ref  : [1, Dpad]      f32 concatenated + lane-padded bias     (resident)
    out_ref: [TILE_M, Dpad] lane-dense output slab (f32)
    """
    acc = jnp.dot(x_ref[...], w_ref[...], preferred_element_type=jnp.float32)
    out_ref[...] = (acc + b_ref[...]).astype(out_ref.dtype)


def prepare_task_decoder_params(w0, b0, w1, b1, compute_dtype=jnp.bfloat16):
    """Fuse the two heads ONCE (outside the hot path).

    w_i: [H, D_i], b_i: [1, D_i]  ->  (w_pad [H, Dpad] compute_dtype,
                                       b_pad [1, Dpad] f32,
                                       dims  (D0, D1))
    """
    D0, D1 = w0.shape[1], w1.shape[1]
    Dcat = D0 + D1
    Dpad = _round_up(Dcat, 128)  # lane-dense output width
    w_cat = jnp.concatenate([w0, w1], axis=1)
    b_cat = jnp.concatenate([b0, b1], axis=1)
    w_pad = jnp.pad(w_cat, ((0, 0), (0, Dpad - Dcat))).astype(compute_dtype)
    b_pad = jnp.pad(b_cat, ((0, 0), (0, Dpad - Dcat))).astype(jnp.float32)
    return w_pad, b_pad, (D0, D1)


@functools.partial(jax.jit, static_argnames=("dims", "tile_m"))
def task_decoder_forward(x, w_pad, b_pad, *, dims, tile_m=1024):
    """x: [B, N, H]; fused params from prepare_task_decoder_params.

    Returns (hints [B, N, D0], outputs [B, N, D1]) in x.dtype.
    """
    B, N, H = x.shape
    D0, D1 = dims
    Dcat = D0 + D1
    Dpad = w_pad.shape[1]
    out_dtype = x.dtype
    compute_dtype = w_pad.dtype

    # Flatten tokens; stream rows in compute_dtype (bf16 halves HBM traffic).
    M = B * N
    x2d = x.reshape(M, H).astype(compute_dtype)

    # Sublane-aligned row tile (multiple of 16 for bf16 packing); no x padding:
    # the final block may be partial (row-independent op, masked OOB writes).
    tile_m = _round_up(tile_m, 16)
    tm = min(tile_m, _round_up(M, 16))
    grid = (pl.cdiv(M, tm),)

    xb = jnp.dtype(compute_dtype).itemsize
    ob = jnp.dtype(out_dtype).itemsize

    # Right-sized VMEM budget: 2x buffers for streamed x / out, 1x for the
    # resident weights + bias, plus slack.  Capped at 48 MiB (v7x headroom).
    vmem_need = (2 * tm * H * xb          # x double buffer
                 + 2 * tm * Dpad * ob     # out double buffer
                 + H * Dpad * xb          # weights (Buffered(1))
                 + 8 * Dpad * 4)          # bias (padded tile)
    vmem_limit = int(min(vmem_need + (4 << 20), 48 << 20))

    cost = pl.CostEstimate(
        flops=2 * M * H * Dpad,
        transcendentals=0,
        bytes_accessed=M * H * xb + H * Dpad * xb + Dpad * 4 + M * Dpad * ob,
    )

    out2d = pl.pallas_call(
        _task_decoder_kernel,
        out_shape=jax.ShapeDtypeStruct((M, Dpad), out_dtype),
        grid=grid,
        in_specs=[
            # Streamed row tiles (default double-buffered).
            pl.BlockSpec((tm, H), lambda i: (i, 0)),
            # VMEM-resident fused weights / bias: constant index_map, so a
            # single buffer is enough (halves their VMEM footprint).
            pl.BlockSpec((H, Dpad), lambda i: (0, 0),
                         pipeline_mode=pl.Buffered(1)),
            pl.BlockSpec((1, Dpad), lambda i: (0, 0),
                         pipeline_mode=pl.Buffered(1)),
        ],
        out_specs=pl.BlockSpec((tm, Dpad), lambda i: (i, 0)),
        compiler_params=pltpu.CompilerParams(
            dimension_semantics=("parallel",),  # row tiles are independent
            vmem_limit_bytes=vmem_limit,
        ),
        cost_estimate=cost,
    )(x2d, w_pad, b_pad)

    hints = out2d[:, :D0].reshape(B, N, D0)
    outputs = out2d[:, D0:Dcat].reshape(B, N, D1)
    return hints, outputs


def init_task_decoder_params(key, hidden_dim, output_feature_dims,
                             dtype=jnp.float32):
    """Deterministic synthetic params mirroring nn.Linear(hidden_dim, dim).

    Returns weights already transposed to [hidden, dim] for the kernel.
    """
    params = []
    for i, dim in enumerate(output_feature_dims):
        kw, kb = jax.random.split(jax.random.fold_in(key, i))
        bound = 1.0 / (hidden_dim ** 0.5)
        w = jax.random.uniform(kw, (hidden_dim, dim), dtype, -bound, bound)
        b = jax.random.uniform(kb, (1, dim), dtype, -bound, bound)
        params.append((w, b))
    return params


if __name__ == "__main__":
    key = jax.random.PRNGKey(0)
    k_x, k_p = jax.random.split(key)

    batch, nodes, hidden = 2, 8, 32
    output_feature_dims = (16, 8)

    x = jax.random.normal(k_x, (batch, nodes, hidden), dtype=jnp.float32)
    (w0, b0), (w1, b1) = init_task_decoder_params(
        k_p, hidden, output_feature_dims)

    # Fuse + pad the heads once (hot path only sees the fused params).
    w_pad, b_pad, dims = prepare_task_decoder_params(w0, b0, w1, b1)

    hints, outputs = task_decoder_forward(x, w_pad, b_pad, dims=dims)
    jax.block_until_ready((hints, outputs))

    # Reference check against plain f32 JAX (same math as PyTorch nn.Linear).
    # Kernel streams bf16 inputs with f32 accumulation -> loose-ish tolerance.
    hints_ref = x @ w0 + b0[0]
    outputs_ref = x @ w1 + b1[0]
    assert hints.shape == (batch, nodes, output_feature_dims[0])
    assert outputs.shape == (batch, nodes, output_feature_dims[1])
    assert jnp.allclose(hints, hints_ref, atol=5e-2, rtol=5e-2)
    assert jnp.allclose(outputs, outputs_ref, atol=5e-2, rtol=5e-2)

    print("KERNEL_OK")
</pallas_src>

<mosaic_0001>
module attributes {stable_mosaic.version = 11 : i64} {
  func.func @_task_decoder_kernel(%arg0: i32, %arg1: memref<16x32xbf16, #tpu.memory_space<vmem>>, %arg2: memref<32x128xbf16, #tpu.memory_space<vmem>>, %arg3: memref<1x128xf32, #tpu.memory_space<vmem>>, %arg4: memref<16x128xf32, #tpu.memory_space<vmem>>) attributes {dimension_semantics = [#tpu.dimension_semantics<parallel>], iteration_bounds = array<i64: 1>, scalar_prefetch = 0 : i64, scratch_operands = 0 : i64, tpu.core_type = #tpu.core_type<tc>, window_params = [{transform_indices = @transform_0, window_bounds = array<i64: 16, 32>}, {pipeline_mode = #tpu.pipeline_mode<synchronous>, transform_indices = @transform_1, window_bounds = array<i64: 32, 128>}, {pipeline_mode = #tpu.pipeline_mode<synchronous>, transform_indices = @transform_2, window_bounds = array<i64: 1, 128>}, {transform_indices = @transform_3, window_bounds = array<i64: 16, 128>}]} {
    %c0 = arith.constant 0 : index
    %c0_0 = arith.constant 0 : index
    %0 = vector.load %arg1[%c0, %c0_0] : memref<16x32xbf16, #tpu.memory_space<vmem>>, vector<16x32xbf16>
    %c0_1 = arith.constant 0 : index
    %c0_2 = arith.constant 0 : index
    %1 = vector.load %arg2[%c0_1, %c0_2] : memref<32x128xbf16, #tpu.memory_space<vmem>>, vector<32x128xbf16>
    %cst = arith.constant dense<0.000000e+00> : vector<16x128xf32>
    %2 = tpu.matmul %0, %1, %cst {dimension_numbers = #tpu.dot_dimension_numbers<[1], [0], [0], [1], [0, 0, 1, 1], [], []>} : vector<16x32xbf16>, vector<32x128xbf16>, vector<16x128xf32> -> vector<16x128xf32>
    %c0_3 = arith.constant 0 : index
    %c0_4 = arith.constant 0 : index
    %3 = vector.load %arg3[%c0_3, %c0_4] : memref<1x128xf32, #tpu.memory_space<vmem>>, vector<1x128xf32>
    %4 = vector.broadcast %3 : vector<1x128xf32> to vector<16x128xf32>
    %5 = arith.addf %2, %4 : vector<16x128xf32>
    %c0_5 = arith.constant 0 : index
    %c0_6 = arith.constant 0 : index
    %6 = vector.load %arg4[%c0_5, %c0_6] : memref<16x128xf32, #tpu.memory_space<vmem>>, vector<16x128xf32>
    tpu.vector_store %arg4[%c0_5, %c0_6], %5 {strides = array<i32>} : memref<16x128xf32, #tpu.memory_space<vmem>>, vector<16x128xf32>,
    return
  }
  func.func @transform_0(%arg0: i32) -> (i32, i32) {
    %c0_i32 = arith.constant 0 : i32
    %c0_i32_0 = arith.constant 0 : i32
    return %arg0, %c0_i32 : i32, i32
  }
  func.func @transform_1(%arg0: i32) -> (i32, i32) {
    %c0_i32 = arith.constant 0 : i32
    %c0_i32_0 = arith.constant 0 : i32
    %c0_i32_1 = arith.constant 0 : i32
    return %c0_i32, %c0_i32_0 : i32, i32
  }
  func.func @transform_2(%arg0: i32) -> (i32, i32) {
    %c0_i32 = arith.constant 0 : i32
    %c0_i32_0 = arith.constant 0 : i32
    %c0_i32_1 = arith.constant 0 : i32
    return %c0_i32, %c0_i32_0 : i32, i32
  }
  func.func @transform_3(%arg0: i32) -> (i32, i32) {
    %c0_i32 = arith.constant 0 : i32
    %c0_i32_0 = arith.constant 0 : i32
    return %arg0, %c0_i32 : i32, i32
  }
}

</mosaic_0001>

<llo_original>
// kernel: task_decoder_forward.1
$region0: #{task_decoder_forward.1}
  #allocation0 [shape = 'u32[]', space=smem, size = 0x4, offset = 0x4, fixed_abs, tag = 'smem constant byte address 0x4 - core index']
  #allocation1 [shape = 'u32[144,128]{1,0:T(1,128)}', space=vmem, size = 0x12000, scoped, tag = 'internal scratch']
  %s0 = inlined_call_operand.vmem [shape: bf16[16,32], index: 0, kind: input, shape index: {}]
  %s1 = inlined_call_operand.vmem [shape: bf16[32,128], index: 1, kind: input, shape index: {}]
  %s2 = inlined_call_operand.vmem [shape: f32[1,128], index: 2, kind: input, shape index: {}]
  %s3 = inlined_call_operand.vmem [shape: f32[16,128], index: 3, kind: output, shape index: {}]
  %s4 = sld [smem:[#allocation0]]
  $region22: #{task_decoder_forward.1} parent=0
    _
  %s6 = ssub.s32 1, %s4
  %s7 = scalar_select 0, %s6, %s4
  // Predicated region
  $region2: #{task_decoder_forward.1} parent=0 // pred_check
    _
  $region3: #{task_decoder_forward.1} parent=0 // pred_check_branch
    %9 = sbr.rel (0) target = $region5
  $region4: #{task_decoder_forward.1} parent=0 // pred_region
    _
  $region5: #{task_decoder_forward.1} parent=0 // pred_fallthru
    _
  // Predicated region
  $region6: #{task_decoder_forward.1} parent=0 // pred_check
    _
  $region7: #{task_decoder_forward.1} parent=0 // pred_check_branch
    %11 = sbr.rel (0) target = $region9
  $region8: #{task_decoder_forward.1} parent=0 // pred_region
    _
  $region9: #{task_decoder_forward.1} parent=0 // pred_fallthru
    _
  // Predicated region
  $region10: #{task_decoder_forward.1} parent=0 // pred_check
    _
  $region11: #{task_decoder_forward.1} parent=0 // pred_check_branch
    %13 = sbr.rel (0) target = $region13
  $region12: #{task_decoder_forward.1} parent=0 // pred_region
    _
  $region13: #{task_decoder_forward.1} parent=0 // pred_fallthru
    _
  %v15 = vld [vmem:[%s0] sm:$0xf]
  %v16 = vld [vmem:[%s0 + $0x4] sm:$0xf]
  %v17 = vld [vmem:[%s1] sm:$0xf]
  %v18 = vld [vmem:[%s1 + $0x4] sm:$0xf]
  %v19 = vld [vmem:[%s1 + $0x8] sm:$0xf]
  %v20 = vld [vmem:[%s1 + $0xc] sm:$0xf]
  %v21 = vld [vmem:[%s2] sm:$0x1]
  %v23 = vlaneseq
  %v24 = vshrl.u32 %v23, 7
  %v25 = vsub.s32 0, %v24
  %v26 = vrot.slane %v21, %v25
  %v30 = vunpack.c.l.b16 %v15
  %v31 = vunpack.c.l.b16 %v16
  %v32 = vpack.c.b16 %v31, %v30
  %v37 = vunpack.c.l.b16 %v17
  %v38 = vunpack.c.l.b16 %v18
  %v39 = vunpack.c.l.b16 %v19
  %v40 = vunpack.c.l.b16 %v20
  %v41 = vpack.c.b16 %v38, %v37
  %v42 = vpack.c.b16 %v40, %v39
  %vm45 = vcmask 261120
  %v47 = vsel %vm45, %v32, 0
  %49 = vmatprep.subr.bf16.mxu0 0
  %50 = vmatpush1.bf16.msra.mxu0 0
  %51 = vmatprep.subr.bf16.mxu0 0
  %52 = vmatpush1.bf16.msra.mxu0 0
  %53 = vmatprep.subr.bf16.mxu0 0
  %54 = vmatpush1.bf16.msra.mxu0 0
  %55 = vmatprep.subr.bf16.mxu0 0
  %56 = vmatpush1.bf16.msra.mxu0 0
  %57 = vmatprep.subr.bf16.mxu0 0
  %58 = vmatpush1.bf16.msra.mxu0 0
  %59 = vmatprep.subr.bf16.mxu0 0
  %60 = vmatpush1.bf16.msra.mxu0 0
  %61 = vmatprep.subr.bf16.mxu0 0
  %62 = vmatpush1.bf16.msra.mxu0 %v42
  %63 = vmatprep.subr.bf16.mxu0 0
  %64 = vmatpush1.bf16.msra.mxu0 %v41
  %65 = vmatprep.subr.bf16.mxu0 0
  %66 = vmatpush2.bf16.msra.mxu0 0
  %67 = vmatprep.subr.bf16.mxu0 0
  %68 = vmatpush2.bf16.msra.mxu0 0
  %69 = vmatprep.subr.bf16.mxu0 0
  %70 = vmatpush2.bf16.msra.mxu0 0
  %71 = vmatprep.subr.bf16.mxu0 0
  %72 = vmatpush2.bf16.msra.mxu0 0
  %73 = vmatprep.subr.bf16.mxu0 0
  %74 = vmatpush2.bf16.msra.mxu0 0
  %75 = vmatprep.subr.bf16.mxu0 0
  %76 = vmatpush2.bf16.msra.mxu0 0
  %77 = vmatprep.subr.bf16.mxu0 0
  %78 = vmatpush2.bf16.msra.mxu0 0
  %79 = vmatprep.subr.bf16.mxu0 0
  %80 = vmatpush2.bf16.msra.mxu0 0
  %81 = vmatprep.mubr.bf16.mxu0 0
  %82 = vmatmul.mubr.bf16.gmra.mxu0 %v47
  %v83 = vpop.f32.mrf.mxu0
  %v84 = vadd.f32 %v26, %v83
  %v85 = vpop.f32.mrf.mxu0
  %v86 = vpop.f32.mrf.mxu0
  %v87 = vadd.f32 %v26, %v86
  %v88 = vpop.f32.mrf.mxu0
  %89 = vdwg.mxu0
  %90 = vst [vmem:[%s3] sm:$0xff] %v84
  %91 = vst [vmem:[%s3 + $0x8] sm:$0xff] %v87
  // Predicated region
  $region14: #{task_decoder_forward.1} parent=0 // pred_check
    _
  $region15: #{task_decoder_forward.1} parent=0 // pred_check_branch
    %93 = sbr.rel (0) target = $region17
  $region16: #{task_decoder_forward.1} parent=0 // pred_region
    _
  $region17: #{task_decoder_forward.1} parent=0 // pred_fallthru
    _
  // Predicated region
  $region18: #{task_decoder_forward.1} parent=0 // pred_check
    _
  $region19: #{task_decoder_forward.1} parent=0 // pred_check_branch
    %95 = sbr.rel (0) target = $region21
  $region20: #{task_decoder_forward.1} parent=0 // pred_region
    _
  $region21: #{task_decoder_forward.1} parent=0 // pred_fallthru
    _

</llo_original>
